<compile_context>
chip_gen: v7x
topology: tpu7x:2x2x1
jax: 0.10.0
libtpu: 0.0.40
codegen_flags: <defaults>
</compile_context>

<pallas_src>
import functools
import math

import jax
import jax.numpy as jnp
from jax.experimental import pallas as pl
from jax.experimental.pallas import tpu as pltpu

_LN_EPS = 1e-5          # PyTorch nn.LayerNorm default
_LRELU_SLOPE = 0.2      # LinearOutputStack activation: leaky_relu(x, 0.2)


def _generate_mix_kernel(x_ref,
                         w0_ref, p0_ref,
                         w1_ref, p1_ref,
                         w2_ref, p2_ref,
                         w3_ref, b3_ref,
                         out_ref):
    """Fused [Linear+LayerNorm+LeakyReLU] x3 + Linear + (degenerate) softmax.

    Transposed layout: activations are (features, TM) — features on sublanes,
    rows on lanes.

    x_ref:   (TM, latent_dim) tile of input rows (natural layout; the transpose
             is folded into the first dot's contraction dims).
    wK_ref:  (out_features, in_features), bf16, resident (PyTorch-native layout).
    pK_ref:  (channels, 3), f32, columns = [linear bias, LN gamma, LN beta].
    b3_ref:  (mixer_channels, 1), f32.
    out_ref: (mixer_channels, TM).
    """
    # bf16 operands for the MXU (f32 accumulation); LN math stays f32.
    x_bf = x_ref[...].astype(jnp.bfloat16)                        # (TM, L)

    # Layer 0: h[c, r] = sum_l W0[c, l] * x[r, l]  ->  (C, TM), f32 accumulate.
    h = jax.lax.dot_general(w0_ref[...], x_bf,
                            (((1,), (1,)), ((), ())),
                            preferred_element_type=jnp.float32)

    def ln_lrelu(h, p_ref):
        p = p_ref[...]                                            # (C, 3) f32
        b, g, be = p[:, 0:1], p[:, 1:2], p[:, 2:3]                # (C, 1) each
        h = h + b                                                 # linear bias
        # LayerNorm over the channel (sublane) axis — single fused stats pass.
        inv_c = 1.0 / h.shape[0]
        mu = jnp.sum(h, axis=0, keepdims=True) * inv_c            # (1, TM)
        ex2 = jnp.sum(h * h, axis=0, keepdims=True) * inv_c       # (1, TM)
        var = ex2 - mu * mu
        h = (h - mu) * jax.lax.rsqrt(var + _LN_EPS)
        h = h * g + be
        # LeakyReLU(0.2)
        return jnp.where(h >= 0.0, h, _LRELU_SLOPE * h)

    h = ln_lrelu(h, p0_ref)
    h = jnp.dot(w1_ref[...], h.astype(jnp.bfloat16),
                preferred_element_type=jnp.float32)
    h = ln_lrelu(h, p1_ref)
    h = jnp.dot(w2_ref[...], h.astype(jnp.bfloat16),
                preferred_element_type=jnp.float32)
    h = ln_lrelu(h, p2_ref)

    # Final projection to mixer_channels (transposed: (mix, TM)).
    y = jnp.dot(w3_ref[...], h.astype(jnp.bfloat16),
                preferred_element_type=jnp.float32) + b3_ref[...]

    # torch.softmax over the size-1 last dim of the (-1, enc, 1) view is
    # identically 1.0; `y*0+1` keeps NaN/Inf propagation from the logits
    # without spending the EUP exp / VPU divide.
    out_ref[...] = (y * 0.0 + 1.0).astype(out_ref.dtype)


def init_generate_mix_params(key, latent_dim, channels, mixer_channels=2):
    """Deterministic parameter init (shapes match the PyTorch module).

    Weights kept in PyTorch-native (out, in) layout and stored bf16 (MXU
    operands); LayerNorm/bias params stay f32 and are packed per layer as a
    (channels, 3) array with columns [linear bias, LN gamma, LN beta].
    """
    ks = jax.random.split(key, 4)

    def lin(k, fan_in, fan_out):
        bound = 1.0 / math.sqrt(fan_in)
        kw, kb = jax.random.split(k)
        w = jax.random.uniform(kw, (fan_out, fan_in), jnp.float32, -bound, bound)
        b = jax.random.uniform(kb, (fan_out,), jnp.float32, -bound, bound)
        return w, b

    w0, b0 = lin(ks[0], latent_dim, channels)
    w1, b1 = lin(ks[1], channels, channels)
    w2, b2 = lin(ks[2], channels, channels)
    w3, b3 = lin(ks[3], channels, mixer_channels)
    ones = jnp.ones((channels,), jnp.float32)
    zeros = jnp.zeros((channels,), jnp.float32)

    def pack(b, g, be):
        return jnp.stack([b, g, be], axis=1)          # (channels, 3)

    return dict(
        w0=w0.astype(jnp.bfloat16), p0=pack(b0, ones, zeros),
        w1=w1.astype(jnp.bfloat16), p1=pack(b1, ones, zeros),
        w2=w2.astype(jnp.bfloat16), p2=pack(b2, ones, zeros),
        w3=w3.astype(jnp.bfloat16), b3=b3.reshape(mixer_channels, 1),
    )


def _round_up(x, n):
    return (x + n - 1) // n * n


@functools.partial(jax.jit,
                   static_argnames=("encoding_channels", "mixer_channels", "block_rows"))
def generate_mix_forward(x, params, *, encoding_channels, mixer_channels=2,
                         block_rows=8192):
    """x: (..., latent_dim)  ->  (-1, encoding_channels, 1)."""
    latent_dim = x.shape[-1]
    m = math.prod(x.shape[:-1]) if x.ndim > 1 else 1
    # No dtype cast here: feed native dtype, cast inside the kernel (saves a
    # full HBM round-trip when the source is bf16).
    x2 = x.reshape(m, latent_dim)

    # Row tile (rows land on the lane axis inside the kernel):
    #   * small m: one full block, no padding constraints.
    #   * large m: lane-aligned (multiple of 128) tile with >= 2 grid steps so
    #     the "parallel" M axis shards across both v7x TensorCores; capped at
    #     block_rows so per-step VMEM stays a few MiB regardless of m.
    if m <= 256:
        tm = m
    else:
        tm = min(_round_up(block_rows, 128), _round_up(pl.cdiv(m, 2), 128))
    grid = (pl.cdiv(m, tm),)

    arg_order = ("w0", "p0", "w1", "p1", "w2", "p2", "w3", "b3")
    args = [params[k] for k in arg_order]

    def resident(a):
        nd = a.ndim
        return pl.BlockSpec(a.shape, lambda i, _nd=nd: (0,) * _nd)

    channels = params["w1"].shape[0]
    flops = 2 * m * (latent_dim * channels
                     + 2 * channels * channels
                     + channels * mixer_channels)
    bytes_accessed = (m * latent_dim * x2.dtype.itemsize
                      + sum(int(a.size) * a.dtype.itemsize for a in args)
                      + m * mixer_channels * jnp.dtype(x.dtype).itemsize)

    out = pl.pallas_call(
        _generate_mix_kernel,
        out_shape=jax.ShapeDtypeStruct((mixer_channels, m), x.dtype),
        grid=grid,
        in_specs=[pl.BlockSpec((tm, latent_dim), lambda i: (i, 0))]
                 + [resident(a) for a in args],
        out_specs=pl.BlockSpec((mixer_channels, tm), lambda i: (0, i)),
        compiler_params=pltpu.CompilerParams(
            dimension_semantics=("parallel",)),
        cost_estimate=pl.CostEstimate(
            flops=flops, transcendentals=0, bytes_accessed=bytes_accessed),
    )(x2, *args)

    # Untranspose the tiny (mixer_channels, m) result and apply the PyTorch
    # view(-1, encoding_channels, 1) glue.
    return out.T.reshape(-1, encoding_channels, 1)


if __name__ == "__main__":
    # Small shapes consistent with the module's forward:
    #   latent_dim=16, channels=32 (hidden), mixer_channels=2, encoding_channels=8
    #   input: (batch=2, n_events=8, latent_dim=16)
    batch, n_events = 2, 8
    latent_dim, channels, encoding_channels, mixer_channels = 16, 32, 8, 2

    key = jax.random.PRNGKey(0)
    k_x, k_p = jax.random.split(key)
    x = jax.random.normal(k_x, (batch, n_events, latent_dim), jnp.float32)
    params = init_generate_mix_params(k_p, latent_dim, channels, mixer_channels)

    out = generate_mix_forward(
        x, params, encoding_channels=encoding_channels,
        mixer_channels=mixer_channels)
    out = jax.block_until_ready(out)

    expected_rows = (batch * n_events * mixer_channels) // encoding_channels
    assert out.shape == (expected_rows, encoding_channels, 1), out.shape
    # softmax over a size-1 axis is exactly 1.0 everywhere
    assert bool(jnp.allclose(out, 1.0)), "softmax over singleton dim must be 1.0"
    print("KERNEL_OK")
</pallas_src>

<mosaic_0001>
module attributes {stable_mosaic.version = 11 : i64} {
  func.func @_generate_mix_kernel(%arg0: i32, %arg1: memref<16x16xf32, #tpu.memory_space<vmem>>, %arg2: memref<32x16xbf16, #tpu.memory_space<vmem>>, %arg3: memref<32x3xf32, #tpu.memory_space<vmem>>, %arg4: memref<32x32xbf16, #tpu.memory_space<vmem>>, %arg5: memref<32x3xf32, #tpu.memory_space<vmem>>, %arg6: memref<32x32xbf16, #tpu.memory_space<vmem>>, %arg7: memref<32x3xf32, #tpu.memory_space<vmem>>, %arg8: memref<2x32xbf16, #tpu.memory_space<vmem>>, %arg9: memref<2x1xf32, #tpu.memory_space<vmem>>, %arg10: memref<2x16xf32, #tpu.memory_space<vmem>>) attributes {dimension_semantics = [#tpu.dimension_semantics<parallel>], iteration_bounds = array<i64: 1>, scalar_prefetch = 0 : i64, scratch_operands = 0 : i64, tpu.core_type = #tpu.core_type<tc>, window_params = [{transform_indices = @transform_0, window_bounds = array<i64: 16, 16>}, {pipeline_mode = #tpu.pipeline_mode<synchronous>, transform_indices = @transform_1, window_bounds = array<i64: 32, 16>}, {pipeline_mode = #tpu.pipeline_mode<synchronous>, transform_indices = @transform_2, window_bounds = array<i64: 32, 3>}, {pipeline_mode = #tpu.pipeline_mode<synchronous>, transform_indices = @transform_3, window_bounds = array<i64: 32, 32>}, {pipeline_mode = #tpu.pipeline_mode<synchronous>, transform_indices = @transform_4, window_bounds = array<i64: 32, 3>}, {pipeline_mode = #tpu.pipeline_mode<synchronous>, transform_indices = @transform_5, window_bounds = array<i64: 32, 32>}, {pipeline_mode = #tpu.pipeline_mode<synchronous>, transform_indices = @transform_6, window_bounds = array<i64: 32, 3>}, {pipeline_mode = #tpu.pipeline_mode<synchronous>, transform_indices = @transform_7, window_bounds = array<i64: 2, 32>}, {pipeline_mode = #tpu.pipeline_mode<synchronous>, transform_indices = @transform_8, window_bounds = array<i64: 2, 1>}, {transform_indices = @transform_9, window_bounds = array<i64: 2, 16>}]} {
    %c0 = arith.constant 0 : index
    %c0_0 = arith.constant 0 : index
    %0 = vector.load %arg1[%c0, %c0_0] : memref<16x16xf32, #tpu.memory_space<vmem>>, vector<16x16xf32>
    %1 = arith.truncf %0 : vector<16x16xf32> to vector<16x16xbf16>
    %c0_1 = arith.constant 0 : index
    %c0_2 = arith.constant 0 : index
    %2 = vector.load %arg2[%c0_1, %c0_2] : memref<32x16xbf16, #tpu.memory_space<vmem>>, vector<32x16xbf16>
    %cst = arith.constant dense<0.000000e+00> : vector<32x16xf32>
    %3 = tpu.matmul %2, %1, %cst {dimension_numbers = #tpu.dot_dimension_numbers<[1], [1], [0], [0], [0, 0, 1, 0], [], []>} : vector<32x16xbf16>, vector<16x16xbf16>, vector<32x16xf32> -> vector<32x16xf32>
    %c0_3 = arith.constant 0 : index
    %c0_4 = arith.constant 0 : index
    %4 = vector.load %arg3[%c0_3, %c0_4] : memref<32x3xf32, #tpu.memory_space<vmem>>, vector<32x3xf32>
    %5 = vector.extract_strided_slice %4 {offsets = [0, 0], sizes = [32, 1], strides = [1, 1]} : vector<32x3xf32> to vector<32x1xf32>
    %6 = vector.extract_strided_slice %4 {offsets = [0, 1], sizes = [32, 1], strides = [1, 1]} : vector<32x3xf32> to vector<32x1xf32>
    %7 = vector.extract_strided_slice %4 {offsets = [0, 2], sizes = [32, 1], strides = [1, 1]} : vector<32x3xf32> to vector<32x1xf32>
    %8 = vector.broadcast %5 : vector<32x1xf32> to vector<32x16xf32>
    %9 = arith.addf %3, %8 : vector<32x16xf32>
    %cst_5 = arith.constant dense<0.000000e+00> : vector<16xf32>
    %10 = vector.multi_reduction <add>, %9, %cst_5 [0] : vector<32x16xf32> to vector<16xf32>
    %11 = vector.shape_cast %10 : vector<16xf32> to vector<1x16xf32>
    %cst_6 = arith.constant 3.125000e-02 : f32
    %12 = vector.broadcast %cst_6 : f32 to vector<1x16xf32>
    %13 = arith.mulf %11, %12 : vector<1x16xf32>
    %14 = arith.mulf %9, %9 : vector<32x16xf32>
    %cst_7 = arith.constant dense<0.000000e+00> : vector<16xf32>
    %15 = vector.multi_reduction <add>, %14, %cst_7 [0] : vector<32x16xf32> to vector<16xf32>
    %16 = vector.shape_cast %15 : vector<16xf32> to vector<1x16xf32>
    %cst_8 = arith.constant 3.125000e-02 : f32
    %17 = vector.broadcast %cst_8 : f32 to vector<1x16xf32>
    %18 = arith.mulf %16, %17 : vector<1x16xf32>
    %19 = arith.mulf %13, %13 : vector<1x16xf32>
    %20 = arith.subf %18, %19 : vector<1x16xf32>
    %21 = vector.broadcast %13 : vector<1x16xf32> to vector<32x16xf32>
    %22 = arith.subf %9, %21 : vector<32x16xf32>
    %cst_9 = arith.constant 9.99999974E-6 : f32
    %23 = vector.broadcast %cst_9 : f32 to vector<1x16xf32>
    %24 = arith.addf %20, %23 : vector<1x16xf32>
    %25 = math.rsqrt %24 : vector<1x16xf32>
    %26 = vector.broadcast %25 : vector<1x16xf32> to vector<32x16xf32>
    %27 = arith.mulf %22, %26 : vector<32x16xf32>
    %28 = vector.broadcast %6 : vector<32x1xf32> to vector<32x16xf32>
    %29 = arith.mulf %27, %28 : vector<32x16xf32>
    %30 = vector.broadcast %7 : vector<32x1xf32> to vector<32x16xf32>
    %31 = arith.addf %29, %30 : vector<32x16xf32>
    %cst_10 = arith.constant 0.000000e+00 : f32
    %32 = vector.broadcast %cst_10 : f32 to vector<32x16xf32>
    %33 = arith.cmpf oge, %31, %32 : vector<32x16xf32>
    %cst_11 = arith.constant 2.000000e-01 : f32
    %34 = vector.broadcast %cst_11 : f32 to vector<32x16xf32>
    %35 = arith.mulf %34, %31 : vector<32x16xf32>
    %36 = arith.select %33, %31, %35 : vector<32x16xi1>, vector<32x16xf32>
    %c0_12 = arith.constant 0 : index
    %c0_13 = arith.constant 0 : index
    %37 = vector.load %arg4[%c0_12, %c0_13] : memref<32x32xbf16, #tpu.memory_space<vmem>>, vector<32x32xbf16>
    %38 = arith.truncf %36 : vector<32x16xf32> to vector<32x16xbf16>
    %cst_14 = arith.constant dense<0.000000e+00> : vector<32x16xf32>
    %39 = tpu.matmul %37, %38, %cst_14 {dimension_numbers = #tpu.dot_dimension_numbers<[1], [0], [0], [1], [0, 0, 1, 1], [], []>} : vector<32x32xbf16>, vector<32x16xbf16>, vector<32x16xf32> -> vector<32x16xf32>
    %c0_15 = arith.constant 0 : index
    %c0_16 = arith.constant 0 : index
    %40 = vector.load %arg5[%c0_15, %c0_16] : memref<32x3xf32, #tpu.memory_space<vmem>>, vector<32x3xf32>
    %41 = vector.extract_strided_slice %40 {offsets = [0, 0], sizes = [32, 1], strides = [1, 1]} : vector<32x3xf32> to vector<32x1xf32>
    %42 = vector.extract_strided_slice %40 {offsets = [0, 1], sizes = [32, 1], strides = [1, 1]} : vector<32x3xf32> to vector<32x1xf32>
    %43 = vector.extract_strided_slice %40 {offsets = [0, 2], sizes = [32, 1], strides = [1, 1]} : vector<32x3xf32> to vector<32x1xf32>
    %44 = vector.broadcast %41 : vector<32x1xf32> to vector<32x16xf32>
    %45 = arith.addf %39, %44 : vector<32x16xf32>
    %cst_17 = arith.constant dense<0.000000e+00> : vector<16xf32>
    %46 = vector.multi_reduction <add>, %45, %cst_17 [0] : vector<32x16xf32> to vector<16xf32>
    %47 = vector.shape_cast %46 : vector<16xf32> to vector<1x16xf32>
    %cst_18 = arith.constant 3.125000e-02 : f32
    %48 = vector.broadcast %cst_18 : f32 to vector<1x16xf32>
    %49 = arith.mulf %47, %48 : vector<1x16xf32>
    %50 = arith.mulf %45, %45 : vector<32x16xf32>
    %cst_19 = arith.constant dense<0.000000e+00> : vector<16xf32>
    %51 = vector.multi_reduction <add>, %50, %cst_19 [0] : vector<32x16xf32> to vector<16xf32>
    %52 = vector.shape_cast %51 : vector<16xf32> to vector<1x16xf32>
    %cst_20 = arith.constant 3.125000e-02 : f32
    %53 = vector.broadcast %cst_20 : f32 to vector<1x16xf32>
    %54 = arith.mulf %52, %53 : vector<1x16xf32>
    %55 = arith.mulf %49, %49 : vector<1x16xf32>
    %56 = arith.subf %54, %55 : vector<1x16xf32>
    %57 = vector.broadcast %49 : vector<1x16xf32> to vector<32x16xf32>
    %58 = arith.subf %45, %57 : vector<32x16xf32>
    %cst_21 = arith.constant 9.99999974E-6 : f32
    %59 = vector.broadcast %cst_21 : f32 to vector<1x16xf32>
    %60 = arith.addf %56, %59 : vector<1x16xf32>
    %61 = math.rsqrt %60 : vector<1x16xf32>
    %62 = vector.broadcast %61 : vector<1x16xf32> to vector<32x16xf32>
    %63 = arith.mulf %58, %62 : vector<32x16xf32>
    %64 = vector.broadcast %42 : vector<32x1xf32> to vector<32x16xf32>
    %65 = arith.mulf %63, %64 : vector<32x16xf32>
    %66 = vector.broadcast %43 : vector<32x1xf32> to vector<32x16xf32>
    %67 = arith.addf %65, %66 : vector<32x16xf32>
    %cst_22 = arith.constant 0.000000e+00 : f32
    %68 = vector.broadcast %cst_22 : f32 to vector<32x16xf32>
    %69 = arith.cmpf oge, %67, %68 : vector<32x16xf32>
    %cst_23 = arith.constant 2.000000e-01 : f32
    %70 = vector.broadcast %cst_23 : f32 to vector<32x16xf32>
    %71 = arith.mulf %70, %67 : vector<32x16xf32>
    %72 = arith.select %69, %67, %71 : vector<32x16xi1>, vector<32x16xf32>
    %c0_24 = arith.constant 0 : index
    %c0_25 = arith.constant 0 : index
    %73 = vector.load %arg6[%c0_24, %c0_25] : memref<32x32xbf16, #tpu.memory_space<vmem>>, vector<32x32xbf16>
    %74 = arith.truncf %72 : vector<32x16xf32> to vector<32x16xbf16>
    %cst_26 = arith.constant dense<0.000000e+00> : vector<32x16xf32>
    %75 = tpu.matmul %73, %74, %cst_26 {dimension_numbers = #tpu.dot_dimension_numbers<[1], [0], [0], [1], [0, 0, 1, 1], [], []>} : vector<32x32xbf16>, vector<32x16xbf16>, vector<32x16xf32> -> vector<32x16xf32>
    %c0_27 = arith.constant 0 : index
    %c0_28 = arith.constant 0 : index
    %76 = vector.load %arg7[%c0_27, %c0_28] : memref<32x3xf32, #tpu.memory_space<vmem>>, vector<32x3xf32>
    %77 = vector.extract_strided_slice %76 {offsets = [0, 0], sizes = [32, 1], strides = [1, 1]} : vector<32x3xf32> to vector<32x1xf32>
    %78 = vector.extract_strided_slice %76 {offsets = [0, 1], sizes = [32, 1], strides = [1, 1]} : vector<32x3xf32> to vector<32x1xf32>
    %79 = vector.extract_strided_slice %76 {offsets = [0, 2], sizes = [32, 1], strides = [1, 1]} : vector<32x3xf32> to vector<32x1xf32>
    %80 = vector.broadcast %77 : vector<32x1xf32> to vector<32x16xf32>
    %81 = arith.addf %75, %80 : vector<32x16xf32>
    %cst_29 = arith.constant dense<0.000000e+00> : vector<16xf32>
    %82 = vector.multi_reduction <add>, %81, %cst_29 [0] : vector<32x16xf32> to vector<16xf32>
    %83 = vector.shape_cast %82 : vector<16xf32> to vector<1x16xf32>
    %cst_30 = arith.constant 3.125000e-02 : f32
    %84 = vector.broadcast %cst_30 : f32 to vector<1x16xf32>
    %85 = arith.mulf %83, %84 : vector<1x16xf32>
    %86 = arith.mulf %81, %81 : vector<32x16xf32>
    %cst_31 = arith.constant dense<0.000000e+00> : vector<16xf32>
    %87 = vector.multi_reduction <add>, %86, %cst_31 [0] : vector<32x16xf32> to vector<16xf32>
    %88 = vector.shape_cast %87 : vector<16xf32> to vector<1x16xf32>
    %cst_32 = arith.constant 3.125000e-02 : f32
    %89 = vector.broadcast %cst_32 : f32 to vector<1x16xf32>
    %90 = arith.mulf %88, %89 : vector<1x16xf32>
    %91 = arith.mulf %85, %85 : vector<1x16xf32>
    %92 = arith.subf %90, %91 : vector<1x16xf32>
    %93 = vector.broadcast %85 : vector<1x16xf32> to vector<32x16xf32>
    %94 = arith.subf %81, %93 : vector<32x16xf32>
    %cst_33 = arith.constant 9.99999974E-6 : f32
    %95 = vector.broadcast %cst_33 : f32 to vector<1x16xf32>
    %96 = arith.addf %92, %95 : vector<1x16xf32>
    %97 = math.rsqrt %96 : vector<1x16xf32>
    %98 = vector.broadcast %97 : vector<1x16xf32> to vector<32x16xf32>
    %99 = arith.mulf %94, %98 : vector<32x16xf32>
    %100 = vector.broadcast %78 : vector<32x1xf32> to vector<32x16xf32>
    %101 = arith.mulf %99, %100 : vector<32x16xf32>
    %102 = vector.broadcast %79 : vector<32x1xf32> to vector<32x16xf32>
    %103 = arith.addf %101, %102 : vector<32x16xf32>
    %cst_34 = arith.constant 0.000000e+00 : f32
    %104 = vector.broadcast %cst_34 : f32 to vector<32x16xf32>
    %105 = arith.cmpf oge, %103, %104 : vector<32x16xf32>
    %cst_35 = arith.constant 2.000000e-01 : f32
    %106 = vector.broadcast %cst_35 : f32 to vector<32x16xf32>
    %107 = arith.mulf %106, %103 : vector<32x16xf32>
    %108 = arith.select %105, %103, %107 : vector<32x16xi1>, vector<32x16xf32>
    %c0_36 = arith.constant 0 : index
    %c0_37 = arith.constant 0 : index
    %109 = vector.load %arg8[%c0_36, %c0_37] : memref<2x32xbf16, #tpu.memory_space<vmem>>, vector<2x32xbf16>
    %110 = arith.truncf %108 : vector<32x16xf32> to vector<32x16xbf16>
    %cst_38 = arith.constant dense<0.000000e+00> : vector<2x16xf32>
    %111 = tpu.matmul %109, %110, %cst_38 {dimension_numbers = #tpu.dot_dimension_numbers<[1], [0], [0], [1], [0, 0, 1, 1], [], []>} : vector<2x32xbf16>, vector<32x16xbf16>, vector<2x16xf32> -> vector<2x16xf32>
    %c0_39 = arith.constant 0 : index
    %c0_40 = arith.constant 0 : index
    %112 = vector.load %arg9[%c0_39, %c0_40] : memref<2x1xf32, #tpu.memory_space<vmem>>, vector<2x1xf32>
    %113 = vector.broadcast %112 : vector<2x1xf32> to vector<2x16xf32>
    %114 = arith.addf %111, %113 : vector<2x16xf32>
    %cst_41 = arith.constant 0.000000e+00 : f32
    %115 = vector.broadcast %cst_41 : f32 to vector<2x16xf32>
    %116 = arith.mulf %114, %115 : vector<2x16xf32>
    %cst_42 = arith.constant 1.000000e+00 : f32
    %117 = vector.broadcast %cst_42 : f32 to vector<2x16xf32>
    %118 = arith.addf %116, %117 : vector<2x16xf32>
    %c0_43 = arith.constant 0 : index
    %c0_44 = arith.constant 0 : index
    %119 = vector.load %arg10[%c0_43, %c0_44] : memref<2x16xf32, #tpu.memory_space<vmem>>, vector<2x16xf32>
    tpu.vector_store %arg10[%c0_43, %c0_44], %118 {strides = array<i32>} : memref<2x16xf32, #tpu.memory_space<vmem>>, vector<2x16xf32>,
    return
  }
  func.func @transform_0(%arg0: i32) -> (i32, i32) {
    %c0_i32 = arith.constant 0 : i32
    %c0_i32_0 = arith.constant 0 : i32
    return %arg0, %c0_i32 : i32, i32
  }
  func.func @transform_1(%arg0: i32) -> (i32, i32) {
    %c0_i32 = arith.constant 0 : i32
    %c0_i32_0 = arith.constant 0 : i32
    %c0_i32_1 = arith.constant 0 : i32
    return %c0_i32, %c0_i32_0 : i32, i32
  }
  func.func @transform_2(%arg0: i32) -> (i32, i32) {
    %c0_i32 = arith.constant 0 : i32
    %c0_i32_0 = arith.constant 0 : i32
    %c0_i32_1 = arith.constant 0 : i32
    return %c0_i32, %c0_i32_0 : i32, i32
  }
  func.func @transform_3(%arg0: i32) -> (i32, i32) {
    %c0_i32 = arith.constant 0 : i32
    %c0_i32_0 = arith.constant 0 : i32
    %c0_i32_1 = arith.constant 0 : i32
    return %c0_i32, %c0_i32_0 : i32, i32
  }
  func.func @transform_4(%arg0: i32) -> (i32, i32) {
    %c0_i32 = arith.constant 0 : i32
    %c0_i32_0 = arith.constant 0 : i32
    %c0_i32_1 = arith.constant 0 : i32
    return %c0_i32, %c0_i32_0 : i32, i32
  }
  func.func @transform_5(%arg0: i32) -> (i32, i32) {
    %c0_i32 = arith.constant 0 : i32
    %c0_i32_0 = arith.constant 0 : i32
    %c0_i32_1 = arith.constant 0 : i32
    return %c0_i32, %c0_i32_0 : i32, i32
  }
  func.func @transform_6(%arg0: i32) -> (i32, i32) {
    %c0_i32 = arith.constant 0 : i32
    %c0_i32_0 = arith.constant 0 : i32
    %c0_i32_1 = arith.constant 0 : i32
    return %c0_i32, %c0_i32_0 : i32, i32
  }
  func.func @transform_7(%arg0: i32) -> (i32, i32) {
    %c0_i32 = arith.constant 0 : i32
    %c0_i32_0 = arith.constant 0 : i32
    %c0_i32_1 = arith.constant 0 : i32
    return %c0_i32, %c0_i32_0 : i32, i32
  }
  func.func @transform_8(%arg0: i32) -> (i32, i32) {
    %c0_i32 = arith.constant 0 : i32
    %c0_i32_0 = arith.constant 0 : i32
    %c0_i32_1 = arith.constant 0 : i32
    return %c0_i32, %c0_i32_0 : i32, i32
  }
  func.func @transform_9(%arg0: i32) -> (i32, i32) {
    %c0_i32 = arith.constant 0 : i32
    %c0_i32_0 = arith.constant 0 : i32
    return %c0_i32, %arg0 : i32, i32
  }
}

</mosaic_0001>

<llo_original>
// kernel: generate_mix_forward.1
$region0: #{generate_mix_forward.1}
  #allocation0 [shape = 'u32[]', space=smem, size = 0x4, offset = 0x4, fixed_abs, tag = 'smem constant byte address 0x4 - core index']
  #allocation1 [shape = 'u32[144,128]{1,0:T(1,128)}', space=vmem, size = 0x12000, scoped, tag = 'internal scratch']
  %s0 = inlined_call_operand.vmem [shape: f32[16,16], index: 0, kind: input, shape index: {}]
  %s1 = inlined_call_operand.vmem [shape: bf16[32,16], index: 1, kind: input, shape index: {}]
  %s2 = inlined_call_operand.vmem [shape: f32[32,3], index: 2, kind: input, shape index: {}]
  %s3 = inlined_call_operand.vmem [shape: bf16[32,32], index: 3, kind: input, shape index: {}]
  %s4 = inlined_call_operand.vmem [shape: f32[32,3], index: 4, kind: input, shape index: {}]
  %s5 = inlined_call_operand.vmem [shape: bf16[32,32], index: 5, kind: input, shape index: {}]
  %s6 = inlined_call_operand.vmem [shape: f32[32,3], index: 6, kind: input, shape index: {}]
  %s7 = inlined_call_operand.vmem [shape: bf16[2,32], index: 7, kind: input, shape index: {}]
  %s8 = inlined_call_operand.vmem [shape: f32[2,1], index: 8, kind: input, shape index: {}]
  %s9 = inlined_call_operand.vmem [shape: f32[2,16], index: 9, kind: output, shape index: {}]
  %s10 = sld [smem:[#allocation0]]
  $region46: #{generate_mix_forward.1} parent=0
    _
  %s12 = ssub.s32 1, %s10
  %s13 = scalar_select 0, %s12, %s10
  // Predicated region
  $region2: #{generate_mix_forward.1} parent=0 // pred_check
    _
  $region3: #{generate_mix_forward.1} parent=0 // pred_check_branch
    %15 = sbr.rel (0) target = $region5
  $region4: #{generate_mix_forward.1} parent=0 // pred_region
    _
  $region5: #{generate_mix_forward.1} parent=0 // pred_fallthru
    _
  // Predicated region
  $region6: #{generate_mix_forward.1} parent=0 // pred_check
    _
  $region7: #{generate_mix_forward.1} parent=0 // pred_check_branch
    %17 = sbr.rel (0) target = $region9
  $region8: #{generate_mix_forward.1} parent=0 // pred_region
    _
  $region9: #{generate_mix_forward.1} parent=0 // pred_fallthru
    _
  // Predicated region
  $region10: #{generate_mix_forward.1} parent=0 // pred_check
    _
  $region11: #{generate_mix_forward.1} parent=0 // pred_check_branch
    %19 = sbr.rel (0) target = $region13
  $region12: #{generate_mix_forward.1} parent=0 // pred_region
    _
  $region13: #{generate_mix_forward.1} parent=0 // pred_fallthru
    _
  // Predicated region
  $region14: #{generate_mix_forward.1} parent=0 // pred_check
    _
  $region15: #{generate_mix_forward.1} parent=0 // pred_check_branch
    %21 = sbr.rel (0) target = $region17
  $region16: #{generate_mix_forward.1} parent=0 // pred_region
    _
  $region17: #{generate_mix_forward.1} parent=0 // pred_fallthru
    _
  // Predicated region
  $region18: #{generate_mix_forward.1} parent=0 // pred_check
    _
  $region19: #{generate_mix_forward.1} parent=0 // pred_check_branch
    %23 = sbr.rel (0) target = $region21
  $region20: #{generate_mix_forward.1} parent=0 // pred_region
    _
  $region21: #{generate_mix_forward.1} parent=0 // pred_fallthru
    _
  // Predicated region
  $region22: #{generate_mix_forward.1} parent=0 // pred_check
    _
  $region23: #{generate_mix_forward.1} parent=0 // pred_check_branch
    %25 = sbr.rel (0) target = $region25
  $region24: #{generate_mix_forward.1} parent=0 // pred_region
    _
  $region25: #{generate_mix_forward.1} parent=0 // pred_fallthru
    _
  // Predicated region
  $region26: #{generate_mix_forward.1} parent=0 // pred_check
    _
  $region27: #{generate_mix_forward.1} parent=0 // pred_check_branch
    %27 = sbr.rel (0) target = $region29
  $region28: #{generate_mix_forward.1} parent=0 // pred_region
    _
  $region29: #{generate_mix_forward.1} parent=0 // pred_fallthru
    _
  // Predicated region
  $region30: #{generate_mix_forward.1} parent=0 // pred_check
    _
  $region31: #{generate_mix_forward.1} parent=0 // pred_check_branch
    %29 = sbr.rel (0) target = $region33
  $region32: #{generate_mix_forward.1} parent=0 // pred_region
    _
  $region33: #{generate_mix_forward.1} parent=0 // pred_fallthru
    _
  // Predicated region
  $region34: #{generate_mix_forward.1} parent=0 // pred_check
    _
  $region35: #{generate_mix_forward.1} parent=0 // pred_check_branch
    %31 = sbr.rel (0) target = $region37
  $region36: #{generate_mix_forward.1} parent=0 // pred_region
    _
  $region37: #{generate_mix_forward.1} parent=0 // pred_fallthru
    _
  %v33 = vld [vmem:[%s0] sm:$0xff]
  %v34 = vld [vmem:[%s0 + $0x8] sm:$0xff]
  %v35 = vpack.c.bf16 %v34, %v33
  %v36 = vld [vmem:[%s1] sm:$0xf]
  %v37 = vld [vmem:[%s1 + $0x4] sm:$0xf]
  %v38 = vld [vmem:[%s1 + $0x8] sm:$0xf]
  %v39 = vld [vmem:[%s1 + $0xc] sm:$0xf]
  %v40 = vld [vmem:[%s2] sm:$0xff]
  %v41 = vld [vmem:[%s2 + $0x8] sm:$0xff]
  %v42 = vld [vmem:[%s2 + $0x10] sm:$0xff]
  %v43 = vld [vmem:[%s2 + $0x18] sm:$0xff]
  %45 = vset.pattern.permute.xlu0 0
  %46 = vperm.xlu0 %45, %v40
  %v47 = vpop.permute.xlu0 %46
  %50 = vset.pattern.permute.xlu0 0
  %51 = vperm.xlu0 %50, %v41
  %v52 = vpop.permute.xlu0 %51
  %55 = vset.pattern.permute.xlu0 0
  %56 = vperm.xlu0 %55, %v42
  %v57 = vpop.permute.xlu0 %56
  %60 = vset.pattern.permute.xlu0 0
  %61 = vperm.xlu0 %60, %v43
  %v62 = vpop.permute.xlu0 %61
  %v68 = vunpack.c.l.b16 %v36
  %v69 = vunpack.c.l.b16 %v37
  %v70 = vunpack.c.l.b16 %v38
  %v71 = vunpack.c.l.b16 %v39
  %v72 = vpack.c.b16 %v69, %v68
  %v73 = vpack.c.b16 %v71, %v70
  %vm74 = vcmask 130048
  %v76 = vsel %vm74, %v72, 0
  %v79 = vsel %vm74, %v73, 0
  %v82 = vsel %vm74, %v35, 0
  %84 = vmatprep.subr.bf16.mxu0 0
  %85 = vmatpush1.bf16.xpose.msra.mxu0 %v82
  %86 = vmatprep.subr.bf16.mxu0 0
  %87 = vmatpush1.bf16.xpose.msra.mxu0 0
  %88 = vmatprep.subr.bf16.mxu0 0
  %89 = vmatpush1.bf16.xpose.msra.mxu0 0
  %90 = vmatprep.subr.bf16.mxu0 0
  %91 = vmatpush1.bf16.xpose.msra.mxu0 0
  %92 = vmatprep.subr.bf16.mxu0 0
  %93 = vmatpush1.bf16.xpose.msra.mxu0 0
  %94 = vmatprep.subr.bf16.mxu0 0
  %95 = vmatpush1.bf16.xpose.msra.mxu0 0
  %96 = vmatprep.subr.bf16.mxu0 0
  %97 = vmatpush1.bf16.xpose.msra.mxu0 0
  %98 = vmatprep.subr.bf16.mxu0 0
  %99 = vmatpush1.bf16.xpose.msra.mxu0 0
  %100 = vmatprep.subr.bf16.mxu0 0
  %101 = vmatpush1.bf16.xpose.msra.mxu0 0
  %102 = vmatprep.subr.bf16.mxu0 0
  %103 = vmatpush1.bf16.xpose.msra.mxu0 0
  %104 = vmatprep.subr.bf16.mxu0 0
  %105 = vmatpush1.bf16.xpose.msra.mxu0 0
  %106 = vmatprep.subr.bf16.mxu0 0
  %107 = vmatpush1.bf16.xpose.msra.mxu0 0
  %108 = vmatprep.subr.bf16.mxu0 0
  %109 = vmatpush1.bf16.xpose.msra.mxu0 0
  %110 = vmatprep.subr.bf16.mxu0 0
  %111 = vmatpush1.bf16.xpose.msra.mxu0 0
  %112 = vmatprep.subr.bf16.mxu0 0
  %113 = vmatpush1.bf16.xpose.msra.mxu0 0
  %114 = vmatprep.subr.bf16.mxu0 0
  %115 = vmatpush1.bf16.xpose.msra.mxu0 0
  %116 = vmatprep.mubr.bf16.mxu0 0
  %117 = vmatmul.mubr.bf16.gmra.mrb[0].mxu0 %v76
  %v118 = vpop.f32.mrb[0].mxu0
  %v119 = vadd.f32 %v47, %v118
  %v120 = vpop.f32.mrb[0].mxu0
  %v121 = vpop.f32.mrb[0].mxu0
  %v122 = vadd.f32 %v52, %v121
  %v123 = vpop.f32.mrb[0].mxu0
  %124 = vmatprep.mubr.bf16.mxu0 0
  %125 = vmatmul.mubr.bf16.gmra.mrb[0].mxu0 %v79
  %v126 = vpop.f32.mrb[0].mxu0
  %v127 = vadd.f32 %v57, %v126
  %v128 = vpop.f32.mrb[0].mxu0
  %v129 = vpop.f32.mrb[0].mxu0
  %v130 = vadd.f32 %v62, %v129
  %v131 = vpop.f32.mrb[0].mxu0
  %132 = vdwg.mxu0
  %v133 = vsel %vm74, %v119, 0.0
  %v134 = vsel %vm74, %v122, 0.0
  %v135 = vadd.f32 %v133, %v134
  %v136 = vsel %vm74, %v127, 0.0
  %v137 = vadd.f32 %v135, %v136
  %v138 = vsel %vm74, %v130, 0.0
  %v139 = vadd.f32 %v137, %v138
  %v140 = vrot.slane %v139, 4
  %v141 = vadd.f32 %v139, %v140
  %v142 = vrot.slane %v141, 2
  %v143 = vadd.f32 %v141, %v142
  %v144 = vrot.slane %v143, 1
  %v145 = vadd.f32 %v143, %v144
  %v146 = vmul.f32 %v145, 0.03125
  %v147 = vmul.f32 %v119, %v119
  %v148 = vmul.f32 %v122, %v122
  %v149 = vmul.f32 %v127, %v127
  %v150 = vmul.f32 %v130, %v130
  %v151 = vsel %vm74, %v147, 0.0
  %v152 = vsel %vm74, %v148, 0.0
  %v153 = vadd.f32 %v151, %v152
  %v154 = vsel %vm74, %v149, 0.0
  %v155 = vadd.f32 %v153, %v154
  %v156 = vsel %vm74, %v150, 0.0
  %v157 = vadd.f32 %v155, %v156
  %v158 = vrot.slane %v157, 4
  %v159 = vadd.f32 %v157, %v158
  %v160 = vrot.slane %v159, 2
  %v161 = vadd.f32 %v159, %v160
  %v162 = vrot.slane %v161, 1
  %v163 = vadd.f32 %v161, %v162
  %v164 = vmul.f32 %v163, 0.03125
  %v165 = vmul.f32 %v146, %v146
  %v166 = vsub.f32 %v164, %v165
  %v167 = vsub.f32 %v119, %v146
  %v168 = vsub.f32 %v122, %v146
  %v169 = vsub.f32 %v127, %v146
  %v170 = vsub.f32 %v130, %v146
  %v171 = vadd.f32 %v166, 1e-05
  %v172 = vrsqrt.pop %v171
  %v173 = vmul.f32 %v167, %v172
  %v174 = vmul.f32 %v168, %v172
  %v175 = vmul.f32 %v169, %v172
  %v176 = vmul.f32 %v170, %v172
  %177 = vset.pattern.permute.xlu0 1
  %178 = vperm.xlu0 %177, %v40
  %v179 = vpop.permute.xlu0 %178
  %181 = vset.pattern.permute.xlu0 1
  %182 = vperm.xlu0 %181, %v41
  %v183 = vpop.permute.xlu0 %182
  %185 = vset.pattern.permute.xlu0 1
  %186 = vperm.xlu0 %185, %v42
  %v187 = vpop.permute.xlu0 %186
  %189 = vset.pattern.permute.xlu0 1
  %190 = vperm.xlu0 %189, %v43
  %v191 = vpop.permute.xlu0 %190
  %v193 = vmul.f32 %v173, %v179
  %v194 = vmul.f32 %v174, %v183
  %v195 = vmul.f32 %v175, %v187
  %v196 = vmul.f32 %v176, %v191
  %197 = vset.pattern.permute.xlu0 2
  %198 = vperm.xlu0 %197, %v40
  %v199 = vpop.permute.xlu0 %198
  %201 = vset.pattern.permute.xlu0 2
  %202 = vperm.xlu0 %201, %v41
  %v203 = vpop.permute.xlu0 %202
  %205 = vset.pattern.permute.xlu0 2
  %206 = vperm.xlu0 %205, %v42
  %v207 = vpop.permute.xlu0 %206
  %209 = vset.pattern.permute.xlu0 2
  %210 = vperm.xlu0 %209, %v43
  %v211 = vpop.permute.xlu0 %210
  %v213 = vadd.f32 %v193, %v199
  %v214 = vadd.f32 %v194, %v203
  %v215 = vadd.f32 %v195, %v207
  %v216 = vadd.f32 %v196, %v211
  %vm217 = vcmp.ge.f32.partialorder %v213, 0.0
  %vm218 = vcmp.ge.f32.partialorder %v214, 0.0
  %vm219 = vcmp.ge.f32.partialorder %v215, 0.0
  %vm220 = vcmp.ge.f32.partialorder %v216, 0.0
  %v221 = vmul.f32 %v213, 0.2
  %v222 = vmul.f32 %v214, 0.2
  %v223 = vmul.f32 %v215, 0.2
  %v224 = vmul.f32 %v216, 0.2
  %v225 = vsel %vm217, %v213, %v221
  %v226 = vsel %vm218, %v214, %v222
  %v227 = vsel %vm219, %v215, %v223
  %v228 = vsel %vm220, %v216, %v224
  %v229 = vld [vmem:[%s3] sm:$0xf]
  %v230 = vld [vmem:[%s3 + $0x4] sm:$0xf]
  %v231 = vld [vmem:[%s3 + $0x8] sm:$0xf]
  %v232 = vld [vmem:[%s3 + $0xc] sm:$0xf]
  %v233 = vpack.c.bf16 %v226, %v225
  %v234 = vpack.c.bf16 %v228, %v227
  %v235 = vld [vmem:[%s4] sm:$0xff]
  %v236 = vld [vmem:[%s4 + $0x8] sm:$0xff]
  %v237 = vld [vmem:[%s4 + $0x10] sm:$0xff]
  %v238 = vld [vmem:[%s4 + $0x18] sm:$0xff]
  %240 = vset.pattern.permute.xlu0 0
  %241 = vperm.xlu0 %240, %v235
  %v242 = vpop.permute.xlu0 %241
  %245 = vset.pattern.permute.xlu0 0
  %246 = vperm.xlu0 %245, %v236
  %v247 = vpop.permute.xlu0 %246
  %250 = vset.pattern.permute.xlu0 0
  %251 = vperm.xlu0 %250, %v237
  %v252 = vpop.permute.xlu0 %251
  %255 = vset.pattern.permute.xlu0 0
  %256 = vperm.xlu0 %255, %v238
  %v257 = vpop.permute.xlu0 %256
  %v263 = vunpack.c.l.b16 %v229
  %v264 = vunpack.c.l.b16 %v230
  %v265 = vunpack.c.l.b16 %v231
  %v266 = vunpack.c.l.b16 %v232
  %v267 = vpack.c.b16 %v264, %v263
  %v268 = vpack.c.b16 %v266, %v265
  %vm269 = vcmask 261120
  %v271 = vsel %vm269, %v267, 0
  %v274 = vsel %vm269, %v268, 0
  %276 = vmatprep.subr.bf16.mxu0 0
  %277 = vmatpush1.bf16.msra.mxu0 %v233
  %278 = vmatprep.subr.bf16.mxu0 0
  %279 = vmatpush1.bf16.msra.mxu0 %v234
  %280 = vmatprep.subr.bf16.mxu0 0
  %281 = vmatpush1.bf16.msra.mxu0 0
  %282 = vmatprep.subr.bf16.mxu0 0
  %283 = vmatpush1.bf16.msra.mxu0 0
  %284 = vmatprep.subr.bf16.mxu0 0
  %285 = vmatpush1.bf16.msra.mxu0 0
  %286 = vmatprep.subr.bf16.mxu0 0
  %287 = vmatpush1.bf16.msra.mxu0 0
  %288 = vmatprep.subr.bf16.mxu0 0
  %289 = vmatpush1.bf16.msra.mxu0 0
  %290 = vmatprep.subr.bf16.mxu0 0
  %291 = vmatpush1.bf16.msra.mxu0 0
  %292 = vmatprep.subr.bf16.mxu0 0
  %293 = vmatpush1.bf16.msra.mxu0 0
  %294 = vmatprep.subr.bf16.mxu0 0
  %295 = vmatpush1.bf16.msra.mxu0 0
  %296 = vmatprep.subr.bf16.mxu0 0
  %297 = vmatpush1.bf16.msra.mxu0 0
  %298 = vmatprep.subr.bf16.mxu0 0
  %299 = vmatpush1.bf16.msra.mxu0 0
  %300 = vmatprep.subr.bf16.mxu0 0
  %301 = vmatpush1.bf16.msra.mxu0 0
  %302 = vmatprep.subr.bf16.mxu0 0
  %303 = vmatpush1.bf16.msra.mxu0 0
  %304 = vmatprep.subr.bf16.mxu0 0
  %305 = vmatpush1.bf16.msra.mxu0 0
  %306 = vmatprep.subr.bf16.mxu0 0
  %307 = vmatpush1.bf16.msra.mxu0 0
  %308 = vmatprep.mubr.bf16.mxu0 0
  %309 = vmatmul.mubr.bf16.gmra.mrb[0].mxu0 %v271
  %v310 = vpop.f32.mrb[0].mxu0
  %v311 = vadd.f32 %v242, %v310
  %v312 = vpop.f32.mrb[0].mxu0
  %v313 = vpop.f32.mrb[0].mxu0
  %v314 = vadd.f32 %v247, %v313
  %v315 = vpop.f32.mrb[0].mxu0
  %316 = vmatprep.mubr.bf16.mxu0 0
  %317 = vmatmul.mubr.bf16.gmra.mrb[0].mxu0 %v274
  %v318 = vpop.f32.mrb[0].mxu0
  %v319 = vadd.f32 %v252, %v318
  %v320 = vpop.f32.mrb[0].mxu0
  %v321 = vpop.f32.mrb[0].mxu0
  %v322 = vadd.f32 %v257, %v321
  %v323 = vpop.f32.mrb[0].mxu0
  %324 = vdwg.mxu0
  %v325 = vsel %vm74, %v311, 0.0
  %v326 = vsel %vm74, %v314, 0.0
  %v327 = vadd.f32 %v325, %v326
  %v328 = vsel %vm74, %v319, 0.0
  %v329 = vadd.f32 %v327, %v328
  %v330 = vsel %vm74, %v322, 0.0
  %v331 = vadd.f32 %v329, %v330
  %v332 = vrot.slane %v331, 4
  %v333 = vadd.f32 %v331, %v332
  %v334 = vrot.slane %v333, 2
  %v335 = vadd.f32 %v333, %v334
  %v336 = vrot.slane %v335, 1
  %v337 = vadd.f32 %v335, %v336
  %v338 = vmul.f32 %v337, 0.03125
  %v339 = vmul.f32 %v311, %v311
  %v340 = vmul.f32 %v314, %v314
  %v341 = vmul.f32 %v319, %v319
  %v342 = vmul.f32 %v322, %v322
  %v343 = vsel %vm74, %v339, 0.0
  %v344 = vsel %vm74, %v340, 0.0
  %v345 = vadd.f32 %v343, %v344
  %v346 = vsel %vm74, %v341, 0.0
  %v347 = vadd.f32 %v345, %v346
  %v348 = vsel %vm74, %v342, 0.0
  %v349 = vadd.f32 %v347, %v348
  %v350 = vrot.slane %v349, 4
  %v351 = vadd.f32 %v349, %v350
  %v352 = vrot.slane %v351, 2
  %v353 = vadd.f32 %v351, %v352
  %v354 = vrot.slane %v353, 1
  %v355 = vadd.f32 %v353, %v354
  %v356 = vmul.f32 %v355, 0.03125
  %v357 = vmul.f32 %v338, %v338
  %v358 = vsub.f32 %v356, %v357
  %v359 = vsub.f32 %v311, %v338
  %v360 = vsub.f32 %v314, %v338
  %v361 = vsub.f32 %v319, %v338
  %v362 = vsub.f32 %v322, %v338
  %v363 = vadd.f32 %v358, 1e-05
  %v364 = vrsqrt.pop %v363
  %v365 = vmul.f32 %v359, %v364
  %v366 = vmul.f32 %v360, %v364
  %v367 = vmul.f32 %v361, %v364
  %v368 = vmul.f32 %v362, %v364
  %369 = vset.pattern.permute.xlu0 1
  %370 = vperm.xlu0 %369, %v235
  %v371 = vpop.permute.xlu0 %370
  %373 = vset.pattern.permute.xlu0 1
  %374 = vperm.xlu0 %373, %v236
  %v375 = vpop.permute.xlu0 %374
  %377 = vset.pattern.permute.xlu0 1
  %378 = vperm.xlu0 %377, %v237
  %v379 = vpop.permute.xlu0 %378
  %381 = vset.pattern.permute.xlu0 1
  %382 = vperm.xlu0 %381, %v238
  %v383 = vpop.permute.xlu0 %382
  %v385 = vmul.f32 %v365, %v371
  %v386 = vmul.f32 %v366, %v375
  %v387 = vmul.f32 %v367, %v379
  %v388 = vmul.f32 %v368, %v383
  %389 = vset.pattern.permute.xlu0 2
  %390 = vperm.xlu0 %389, %v235
  %v391 = vpop.permute.xlu0 %390
  %393 = vset.pattern.permute.xlu0 2
  %394 = vperm.xlu0 %393, %v236
  %v395 = vpop.permute.xlu0 %394
  %397 = vset.pattern.permute.xlu0 2
  %398 = vperm.xlu0 %397, %v237
  %v399 = vpop.permute.xlu0 %398
  %401 = vset.pattern.permute.xlu0 2
  %402 = vperm.xlu0 %401, %v238
  %v403 = vpop.permute.xlu0 %402
  %v405 = vadd.f32 %v385, %v391
  %v406 = vadd.f32 %v386, %v395
  %v407 = vadd.f32 %v387, %v399
  %v408 = vadd.f32 %v388, %v403
  %vm409 = vcmp.ge.f32.partialorder %v405, 0.0
  %vm410 = vcmp.ge.f32.partialorder %v406, 0.0
  %vm411 = vcmp.ge.f32.partialorder %v407, 0.0
  %vm412 = vcmp.ge.f32.partialorder %v408, 0.0
  %v413 = vmul.f32 %v405, 0.2
  %v414 = vmul.f32 %v406, 0.2
  %v415 = vmul.f32 %v407, 0.2
  %v416 = vmul.f32 %v408, 0.2
  %v417 = vsel %vm409, %v405, %v413
  %v418 = vsel %vm410, %v406, %v414
  %v419 = vsel %vm411, %v407, %v415
  %v420 = vsel %vm412, %v408, %v416
  %v421 = vld [vmem:[%s5] sm:$0xf]
  %v422 = vld [vmem:[%s5 + $0x4] sm:$0xf]
  %v423 = vld [vmem:[%s5 + $0x8] sm:$0xf]
  %v424 = vld [vmem:[%s5 + $0xc] sm:$0xf]
  %v425 = vpack.c.bf16 %v418, %v417
  %v426 = vpack.c.bf16 %v420, %v419
  %v427 = vld [vmem:[%s6] sm:$0xff]
  %v428 = vld [vmem:[%s6 + $0x8] sm:$0xff]
  %v429 = vld [vmem:[%s6 + $0x10] sm:$0xff]
  %v430 = vld [vmem:[%s6 + $0x18] sm:$0xff]
  %432 = vset.pattern.permute.xlu0 0
  %433 = vperm.xlu0 %432, %v427
  %v434 = vpop.permute.xlu0 %433
  %437 = vset.pattern.permute.xlu0 0
  %438 = vperm.xlu0 %437, %v428
  %v439 = vpop.permute.xlu0 %438
  %442 = vset.pattern.permute.xlu0 0
  %443 = vperm.xlu0 %442, %v429
  %v444 = vpop.permute.xlu0 %443
  %447 = vset.pattern.permute.xlu0 0
  %448 = vperm.xlu0 %447, %v430
  %v449 = vpop.permute.xlu0 %448
  %v455 = vunpack.c.l.b16 %v421
  %v456 = vunpack.c.l.b16 %v422
  %v457 = vunpack.c.l.b16 %v423
  %v458 = vunpack.c.l.b16 %v424
  %v459 = vpack.c.b16 %v456, %v455
  %v460 = vpack.c.b16 %v458, %v457
  %v462 = vsel %vm269, %v459, 0
  %v465 = vsel %vm269, %v460, 0
  %467 = vmatprep.subr.bf16.mxu0 0
  %468 = vmatpush1.bf16.msra.mxu0 %v425
  %469 = vmatprep.subr.bf16.mxu0 0
  %470 = vmatpush1.bf16.msra.mxu0 %v426
  %471 = vmatprep.subr.bf16.mxu0 0
  %472 = vmatpush1.bf16.msra.mxu0 0
  %473 = vmatprep.subr.bf16.mxu0 0
  %474 = vmatpush1.bf16.msra.mxu0 0
  %475 = vmatprep.subr.bf16.mxu0 0
  %476 = vmatpush1.bf16.msra.mxu0 0
  %477 = vmatprep.subr.bf16.mxu0 0
  %478 = vmatpush1.bf16.msra.mxu0 0
  %479 = vmatprep.subr.bf16.mxu0 0
  %480 = vmatpush1.bf16.msra.mxu0 0
  %481 = vmatprep.subr.bf16.mxu0 0
  %482 = vmatpush1.bf16.msra.mxu0 0
  %483 = vmatprep.subr.bf16.mxu0 0
  %484 = vmatpush1.bf16.msra.mxu0 0
  %485 = vmatprep.subr.bf16.mxu0 0
  %486 = vmatpush1.bf16.msra.mxu0 0
  %487 = vmatprep.subr.bf16.mxu0 0
  %488 = vmatpush1.bf16.msra.mxu0 0
  %489 = vmatprep.subr.bf16.mxu0 0
  %490 = vmatpush1.bf16.msra.mxu0 0
  %491 = vmatprep.subr.bf16.mxu0 0
  %492 = vmatpush1.bf16.msra.mxu0 0
  %493 = vmatprep.subr.bf16.mxu0 0
  %494 = vmatpush1.bf16.msra.mxu0 0
  %495 = vmatprep.subr.bf16.mxu0 0
  %496 = vmatpush1.bf16.msra.mxu0 0
  %497 = vmatprep.subr.bf16.mxu0 0
  %498 = vmatpush1.bf16.msra.mxu0 0
  %499 = vmatprep.mubr.bf16.mxu0 0
  %500 = vmatmul.mubr.bf16.gmra.mrb[0].mxu0 %v462
  %v501 = vpop.f32.mrb[0].mxu0
  %v502 = vadd.f32 %v434, %v501
  %v503 = vpop.f32.mrb[0].mxu0
  %v504 = vpop.f32.mrb[0].mxu0
  %v505 = vadd.f32 %v439, %v504
  %v506 = vpop.f32.mrb[0].mxu0
  %507 = vmatprep.mubr.bf16.mxu0 0
  %508 = vmatmul.mubr.bf16.gmra.mrb[0].mxu0 %v465
  %v509 = vpop.f32.mrb[0].mxu0
  %v510 = vadd.f32 %v444, %v509
  %v511 = vpop.f32.mrb[0].mxu0
  %v512 = vpop.f32.mrb[0].mxu0
  %v513 = vadd.f32 %v449, %v512
  %v514 = vpop.f32.mrb[0].mxu0
  %515 = vdwg.mxu0
  %v516 = vsel %vm74, %v502, 0.0
  %v517 = vsel %vm74, %v505, 0.0
  %v518 = vadd.f32 %v516, %v517
  %v519 = vsel %vm74, %v510, 0.0
  %v520 = vadd.f32 %v518, %v519
  %v521 = vsel %vm74, %v513, 0.0
  %v522 = vadd.f32 %v520, %v521
  %v523 = vrot.slane %v522, 4
  %v524 = vadd.f32 %v522, %v523
  %v525 = vrot.slane %v524, 2
  %v526 = vadd.f32 %v524, %v525
  %v527 = vrot.slane %v526, 1
  %v528 = vadd.f32 %v526, %v527
  %v529 = vmul.f32 %v528, 0.03125
  %v530 = vmul.f32 %v502, %v502
  %v531 = vmul.f32 %v505, %v505
  %v532 = vmul.f32 %v510, %v510
  %v533 = vmul.f32 %v513, %v513
  %v534 = vsel %vm74, %v530, 0.0
  %v535 = vsel %vm74, %v531, 0.0
  %v536 = vadd.f32 %v534, %v535
  %v537 = vsel %vm74, %v532, 0.0
  %v538 = vadd.f32 %v536, %v537
  %v539 = vsel %vm74, %v533, 0.0
  %v540 = vadd.f32 %v538, %v539
  %v541 = vrot.slane %v540, 4
  %v542 = vadd.f32 %v540, %v541
  %v543 = vrot.slane %v542, 2
  %v544 = vadd.f32 %v542, %v543
  %v545 = vrot.slane %v544, 1
  %v546 = vadd.f32 %v544, %v545
  %v547 = vmul.f32 %v546, 0.03125
  %v548 = vmul.f32 %v529, %v529
  %v549 = vsub.f32 %v547, %v548
  %v550 = vsub.f32 %v502, %v529
  %v551 = vsub.f32 %v505, %v529
  %v552 = vsub.f32 %v510, %v529
  %v553 = vsub.f32 %v513, %v529
  %v554 = vadd.f32 %v549, 1e-05
  %v555 = vrsqrt.pop %v554
  %v556 = vmul.f32 %v550, %v555
  %v557 = vmul.f32 %v551, %v555
  %v558 = vmul.f32 %v552, %v555
  %v559 = vmul.f32 %v553, %v555
  %560 = vset.pattern.permute.xlu0 1
  %561 = vperm.xlu0 %560, %v427
  %v562 = vpop.permute.xlu0 %561
  %564 = vset.pattern.permute.xlu0 1
  %565 = vperm.xlu0 %564, %v428
  %v566 = vpop.permute.xlu0 %565
  %568 = vset.pattern.permute.xlu0 1
  %569 = vperm.xlu0 %568, %v429
  %v570 = vpop.permute.xlu0 %569
  %572 = vset.pattern.permute.xlu0 1
  %573 = vperm.xlu0 %572, %v430
  %v574 = vpop.permute.xlu0 %573
  %v576 = vmul.f32 %v556, %v562
  %v577 = vmul.f32 %v557, %v566
  %v578 = vmul.f32 %v558, %v570
  %v579 = vmul.f32 %v559, %v574
  %580 = vset.pattern.permute.xlu0 2
  %581 = vperm.xlu0 %580, %v427
  %v582 = vpop.permute.xlu0 %581
  %584 = vset.pattern.permute.xlu0 2
  %585 = vperm.xlu0 %584, %v428
  %v586 = vpop.permute.xlu0 %585
  %588 = vset.pattern.permute.xlu0 2
  %589 = vperm.xlu0 %588, %v429
  %v590 = vpop.permute.xlu0 %589
  %592 = vset.pattern.permute.xlu0 2
  %593 = vperm.xlu0 %592, %v430
  %v594 = vpop.permute.xlu0 %593
  %v596 = vadd.f32 %v576, %v582
  %v597 = vadd.f32 %v577, %v586
  %v598 = vadd.f32 %v578, %v590
  %v599 = vadd.f32 %v579, %v594
  %vm600 = vcmp.ge.f32.partialorder %v596, 0.0
  %vm601 = vcmp.ge.f32.partialorder %v597, 0.0
  %vm602 = vcmp.ge.f32.partialorder %v598, 0.0
  %vm603 = vcmp.ge.f32.partialorder %v599, 0.0
  %v604 = vmul.f32 %v596, 0.2
  %v605 = vmul.f32 %v597, 0.2
  %v606 = vmul.f32 %v598, 0.2
  %v607 = vmul.f32 %v599, 0.2
  %v608 = vsel %vm600, %v596, %v604
  %v609 = vsel %vm601, %v597, %v605
  %v610 = vsel %vm602, %v598, %v606
  %v611 = vsel %vm603, %v599, %v607
  %v612 = vld [vmem:[%s7] sm:$0x1]
  %v613 = vpack.c.bf16 %v609, %v608
  %v614 = vpack.c.bf16 %v611, %v610
  %v615 = vld [vmem:[%s8] sm:$0x3]
  %617 = vset.pattern.permute.xlu0 0
  %618 = vperm.xlu0 %617, %v615
  %v619 = vpop.permute.xlu0 %618
  %v622 = vsel %vm269, %v612, 0
  %624 = vmatprep.subr.bf16.mxu0 0
  %625 = vmatpush1.bf16.msra.mxu0 %v613
  %626 = vmatprep.subr.bf16.mxu0 0
  %627 = vmatpush1.bf16.msra.mxu0 %v614
  %628 = vmatprep.subr.bf16.mxu0 0
  %629 = vmatpush1.bf16.msra.mxu0 0
  %630 = vmatprep.subr.bf16.mxu0 0
  %631 = vmatpush1.bf16.msra.mxu0 0
  %632 = vmatprep.subr.bf16.mxu0 0
  %633 = vmatpush1.bf16.msra.mxu0 0
  %634 = vmatprep.subr.bf16.mxu0 0
  %635 = vmatpush1.bf16.msra.mxu0 0
  %636 = vmatprep.subr.bf16.mxu0 0
  %637 = vmatpush1.bf16.msra.mxu0 0
  %638 = vmatprep.subr.bf16.mxu0 0
  %639 = vmatpush1.bf16.msra.mxu0 0
  %640 = vmatprep.subr.bf16.mxu0 0
  %641 = vmatpush1.bf16.msra.mxu0 0
  %642 = vmatprep.subr.bf16.mxu0 0
  %643 = vmatpush1.bf16.msra.mxu0 0
  %644 = vmatprep.subr.bf16.mxu0 0
  %645 = vmatpush1.bf16.msra.mxu0 0
  %646 = vmatprep.subr.bf16.mxu0 0
  %647 = vmatpush1.bf16.msra.mxu0 0
  %648 = vmatprep.subr.bf16.mxu0 0
  %649 = vmatpush1.bf16.msra.mxu0 0
  %650 = vmatprep.subr.bf16.mxu0 0
  %651 = vmatpush1.bf16.msra.mxu0 0
  %652 = vmatprep.subr.bf16.mxu0 0
  %653 = vmatpush1.bf16.msra.mxu0 0
  %654 = vmatprep.subr.bf16.mxu0 0
  %655 = vmatpush1.bf16.msra.mxu0 0
  %656 = vmatprep.mubr.bf16.mxu0 0
  %657 = vmatmul.mubr.bf16.gmra.mrb[0].mxu0 %v622
  %v658 = vpop.f32.mrb[0].mxu0
  %v659 = vadd.f32 %v619, %v658
  %v660 = vpop.f32.mrb[0].mxu0
  %v661 = vpop.f32.mrb[0].mxu0
  %v662 = vpop.f32.mrb[0].mxu0
  %663 = vdwg.mxu0
  %v664 = vmul.f32 %v659, 0.0
  %v665 = vadd.f32 %v664, 1.0
  %vm666 = vcmask 123904
  %667 = vst.msk [vmem:[%s9] sm:$0x3] %vm666, %v665
  // Predicated region
  $region38: #{generate_mix_forward.1} parent=0 // pred_check
    _
  $region39: #{generate_mix_forward.1} parent=0 // pred_check_branch
    %669 = sbr.rel (0) target = $region41
  $region40: #{generate_mix_forward.1} parent=0 // pred_region
    _
  $region41: #{generate_mix_forward.1} parent=0 // pred_fallthru
    _
  // Predicated region
  $region42: #{generate_mix_forward.1} parent=0 // pred_check
    _
  $region43: #{generate_mix_forward.1} parent=0 // pred_check_branch
    %671 = sbr.rel (0) target = $region45
  $region44: #{generate_mix_forward.1} parent=0 // pred_region
    _
  $region45: #{generate_mix_forward.1} parent=0 // pred_fallthru
    _

</llo_original>
